<compile_context>
chip_gen: v5e
topology: v5e:2x2
jax: 0.10.0
libtpu: 0.0.40
codegen_flags: <defaults>
</compile_context>

<pallas_src>
import numpy as np
import jax
import jax.numpy as jnp
from jax.experimental import pallas as pl
from jax.experimental.pallas import tpu as pltpu


# Each of the 16 soft gates is linear in (1, a1, a2, a1*a2):
#   gate_k(a1, a2) = C[k,0] + C[k,1]*a1 + C[k,2]*a2 + C[k,3]*a1*a2
_GATE_COEFFS = np.array([
    [0.,  0.,  0.,  0.],   # 0  FALSE
    [0.,  0.,  0.,  1.],   # 1  a1*a2
    [0.,  1.,  0., -1.],   # 2  a1*(1-a2)
    [0.,  1.,  0.,  0.],   # 3  a1
    [0.,  0.,  1., -1.],   # 4  (1-a1)*a2
    [0.,  0.,  1.,  0.],   # 5  a2
    [0.,  1.,  1., -2.],   # 6  XOR
    [0.,  1.,  1., -1.],   # 7  OR
    [1., -1., -1.,  1.],   # 8  NOR
    [1., -1., -1.,  2.],   # 9  XNOR
    [1.,  0., -1.,  0.],   # 10 1-a2
    [1.,  0., -1.,  1.],   # 11 1-a2+a1*a2
    [1., -1.,  0.,  0.],   # 12 1-a1
    [1., -1.,  0.,  1.],   # 13 1-a1+a1*a2
    [1.,  0.,  0., -1.],   # 14 NAND
    [1.,  0.,  0.,  0.],   # 15 TRUE
], dtype=np.float32)                       # [16, 4]


def _round_up(x, m):
    return ((x + m - 1) // m) * m


def _pick_tile(total, max_tile, granule):
    """Largest tile <= max_tile that is a multiple of `granule` and divides `total`
    (falls back to the full extent, which Pallas always accepts)."""
    if total <= max_tile:
        return total
    t = (max_tile // granule) * granule
    while t >= granule:
        if total % t == 0:
            return t
        t -= granule
    return total


def _choose_tiles(batch, fin_pad, n_pad, sel_itemsize):
    # Keep the double-buffered sel1+sel2 tiles under ~16 MiB so the pipeline
    # stays double-buffered even on v7x (32 MiB scoped VMEM default, 64 MiB phys).
    sel_budget = 16 * 1024 * 1024
    max_tn = sel_budget // (4 * fin_pad * sel_itemsize)   # 2 sel * 2 buffers
    max_tn = max(128, min(512, (max_tn // 128) * 128))
    tn = _pick_tile(n_pad, max_tn, 128)
    tb = _pick_tile(batch, 256, 8)
    return tb, tn


def logic_layer_kernel(x_ref, sel1_ref, sel2_ref, c_ref, o_ref):
    # x_ref: [tb, Fin_pad]  sel*_ref: [Fin_pad, tn]  c_ref: [4, tn]  o_ref: [tb, tn]
    x = x_ref[...]
    # Gather a1 = x[:, idx0], a2 = x[:, idx1] as one-hot matmuls (MXU, f32 accumulate).
    a1 = jnp.dot(x, sel1_ref[...], preferred_element_type=jnp.float32)   # [tb, tn]
    a2 = jnp.dot(x, sel2_ref[...], preferred_element_type=jnp.float32)   # [tb, tn]
    c = c_ref[...]                                                       # [4, tn]
    # Affine epilogue: the 16 softmax-weighted gates collapsed to 4 coefficients.
    out = c[0:1, :] + c[1:2, :] * a1 + c[2:3, :] * a2 + c[3:4, :] * (a1 * a2)
    o_ref[...] = out.astype(o_ref.dtype)


def logic_layer(x, sel1, sel2, coeff):
    """x: [B, Fin_pad] f32/bf16,  sel*: [Fin_pad, N_pad],  coeff: [4, N_pad] f32."""
    B, fin_pad = x.shape
    n_pad = sel1.shape[1]
    tb, tn = _choose_tiles(B, fin_pad, n_pad, sel1.dtype.itemsize)
    x = x.astype(sel1.dtype)   # bf16 MXU path when sel matrices are bf16

    # Grid: N-tiles outer, B-tiles inner -> sel/coeff block indices are constant
    # across the inner axis, so those tiles stay resident (no re-DMA per batch tile).
    grid = (n_pad // tn, B // tb)
    return pl.pallas_call(
        logic_layer_kernel,
        out_shape=jax.ShapeDtypeStruct((B, n_pad), jnp.float32),
        grid=grid,
        in_specs=[
            pl.BlockSpec((tb, fin_pad), lambda nj, bi: (bi, 0)),
            pl.BlockSpec((fin_pad, tn), lambda nj, bi: (0, nj)),
            pl.BlockSpec((fin_pad, tn), lambda nj, bi: (0, nj)),
            pl.BlockSpec((4, tn), lambda nj, bi: (0, nj)),
        ],
        out_specs=pl.BlockSpec((tb, tn), lambda nj, bi: (bi, nj)),
        compiler_params=pltpu.CompilerParams(
            dimension_semantics=("parallel", "parallel")),
    )(x, sel1, sel2, coeff)


def gate_coefficients(w_t, n_pad):
    """Hoisted out of the kernel: softmax over the 16 ops + collapse to [4, N_pad].

    Padded neuron columns get all-zero coefficients -> their outputs are 0."""
    probs = jax.nn.softmax(w_t, axis=0)                       # [16, N]
    coeff = jnp.asarray(_GATE_COEFFS).T @ probs               # [4, N]
    n = coeff.shape[1]
    if n != n_pad:
        coeff = jnp.pad(coeff, ((0, 0), (0, n_pad - n)))
    return coeff.astype(jnp.float32)


def build_params(n_inputs, layer_sizes, seed=42, key=None, sel_dtype=jnp.float32):
    """Deterministic parameter construction mirroring LogicGateNetwork.__init__."""
    np.random.seed(seed)
    if key is None:
        key = jax.random.PRNGKey(0)
    params = []
    input_size = n_inputs
    for size in layer_sizes:
        idx = np.stack(
            [np.random.choice(input_size, size=2, replace=False) for _ in range(size)],
            axis=0)                                           # [N, 2] random wiring
        fin_pad = _round_up(input_size, 128)
        n_pad = _round_up(size, 128)
        sel1 = np.zeros((fin_pad, n_pad), dtype=np.float32)
        sel2 = np.zeros((fin_pad, n_pad), dtype=np.float32)
        sel1[idx[:, 0], np.arange(size)] = 1.0
        sel2[idx[:, 1], np.arange(size)] = 1.0
        key, sub = jax.random.split(key)
        w = jax.random.normal(sub, (size, 16), dtype=jnp.float32)  # ~ torch.randn(16)/neuron
        params.append(dict(
            sel1=jnp.asarray(sel1, dtype=sel_dtype),
            sel2=jnp.asarray(sel2, dtype=sel_dtype),
            w_t=jnp.asarray(w.T),          # [16, N]
            idx=idx, n=size, n_pad=n_pad, fin=input_size, fin_pad=fin_pad))
        input_size = size
    return params


def logic_gate_network_forward(x, params):
    for p in params:
        fin_pad = p["fin_pad"]
        if x.shape[1] != fin_pad:
            # Pad features to a lane-dense width; padded columns are never selected.
            x = jnp.pad(x, ((0, 0), (0, fin_pad - x.shape[1])))
        coeff = gate_coefficients(p["w_t"], p["n_pad"])   # softmax hoisted out of kernel
        x = logic_layer(x, p["sel1"], p["sel2"], coeff)   # [B, N_pad]
    return x[:, :params[-1]["n"]]


def reference_forward(x, params):
    """Pure-JAX reference, semantically identical to the PyTorch forward."""
    for p in params:
        idx, w_t = p["idx"], p["w_t"]
        a1 = x[:, idx[:, 0]]   # [B, N]
        a2 = x[:, idx[:, 1]]   # [B, N]
        ops = jnp.stack([
            jnp.zeros_like(a1), a1 * a2, a1 * (1 - a2), a1, (1 - a1) * a2, a2,
            a1 + a2 - 2 * a1 * a2, a1 + a2 - a1 * a2,
            1 - (a1 + a2 - a1 * a2), 1 - (a1 + a2 - 2 * a1 * a2),
            1 - a2, 1 - a2 + a1 * a2, 1 - a1, 1 - a1 + a1 * a2,
            1 - a1 * a2, jnp.ones_like(a1)], axis=1)       # [B, 16, N]
        probs = jax.nn.softmax(w_t, axis=0)                # [16, N]
        x = jnp.sum(probs[None, :, :] * ops, axis=1)       # [B, N]
    return x


if __name__ == "__main__":
    n_inputs = 8
    layer_sizes = [16, 8, 4]
    batch = 4

    root = jax.random.PRNGKey(0)
    k_params, k_data = jax.random.split(root)
    # f32 selection matrices keep the one-hot gather exact (bf16 supported via
    # sel_dtype=jnp.bfloat16 with a looser tolerance).
    params = build_params(n_inputs, layer_sizes, seed=42, key=k_params,
                          sel_dtype=jnp.float32)
    x = jax.random.uniform(k_data, (batch, n_inputs), dtype=jnp.float32)

    out = logic_gate_network_forward(x, params)
    out = jax.block_until_ready(out)

    ref = reference_forward(x, params)
    assert out.shape == (batch, layer_sizes[-1])
    np.testing.assert_allclose(np.asarray(out), np.asarray(ref), rtol=1e-5, atol=1e-5)
    print("KERNEL_OK")
</pallas_src>

<mosaic_0001>
module attributes {stable_mosaic.version = 11 : i64} {
  func.func @logic_layer_kernel(%arg0: i32, %arg1: i32, %arg2: memref<4x128xf32, #tpu.memory_space<vmem>>, %arg3: memref<128x128xf32, #tpu.memory_space<vmem>>, %arg4: memref<128x128xf32, #tpu.memory_space<vmem>>, %arg5: memref<4x128xf32, #tpu.memory_space<vmem>>, %arg6: memref<4x128xf32, #tpu.memory_space<vmem>>) attributes {dimension_semantics = [#tpu.dimension_semantics<parallel>, #tpu.dimension_semantics<parallel>], iteration_bounds = array<i64: 1, 1>, scalar_prefetch = 0 : i64, scratch_operands = 0 : i64, tpu.core_type = #tpu.core_type<tc>, window_params = [{transform_indices = @transform_0, window_bounds = array<i64: 4, 128>}, {transform_indices = @transform_1, window_bounds = array<i64: 128, 128>}, {transform_indices = @transform_2, window_bounds = array<i64: 128, 128>}, {transform_indices = @transform_3, window_bounds = array<i64: 4, 128>}, {transform_indices = @transform_4, window_bounds = array<i64: 4, 128>}]} {
    %c0 = arith.constant 0 : index
    %c0_0 = arith.constant 0 : index
    %0 = vector.load %arg2[%c0, %c0_0] : memref<4x128xf32, #tpu.memory_space<vmem>>, vector<4x128xf32>
    %c0_1 = arith.constant 0 : index
    %c0_2 = arith.constant 0 : index
    %1 = vector.load %arg3[%c0_1, %c0_2] : memref<128x128xf32, #tpu.memory_space<vmem>>, vector<128x128xf32>
    %cst = arith.constant dense<0.000000e+00> : vector<4x128xf32>
    %2 = tpu.matmul %0, %1, %cst {dimension_numbers = #tpu.dot_dimension_numbers<[1], [0], [0], [1], [0, 0, 1, 1], [], []>} : vector<4x128xf32>, vector<128x128xf32>, vector<4x128xf32> -> vector<4x128xf32>
    %c0_3 = arith.constant 0 : index
    %c0_4 = arith.constant 0 : index
    %3 = vector.load %arg4[%c0_3, %c0_4] : memref<128x128xf32, #tpu.memory_space<vmem>>, vector<128x128xf32>
    %cst_5 = arith.constant dense<0.000000e+00> : vector<4x128xf32>
    %4 = tpu.matmul %0, %3, %cst_5 {dimension_numbers = #tpu.dot_dimension_numbers<[1], [0], [0], [1], [0, 0, 1, 1], [], []>} : vector<4x128xf32>, vector<128x128xf32>, vector<4x128xf32> -> vector<4x128xf32>
    %c0_6 = arith.constant 0 : index
    %c0_7 = arith.constant 0 : index
    %5 = vector.load %arg5[%c0_6, %c0_7] : memref<4x128xf32, #tpu.memory_space<vmem>>, vector<4x128xf32>
    %6 = vector.extract_strided_slice %5 {offsets = [0, 0], sizes = [1, 128], strides = [1, 1]} : vector<4x128xf32> to vector<1x128xf32>
    %7 = vector.extract_strided_slice %5 {offsets = [1, 0], sizes = [1, 128], strides = [1, 1]} : vector<4x128xf32> to vector<1x128xf32>
    %8 = vector.broadcast %7 : vector<1x128xf32> to vector<4x128xf32>
    %9 = arith.mulf %8, %2 : vector<4x128xf32>
    %10 = vector.broadcast %6 : vector<1x128xf32> to vector<4x128xf32>
    %11 = arith.addf %10, %9 : vector<4x128xf32>
    %12 = vector.extract_strided_slice %5 {offsets = [2, 0], sizes = [1, 128], strides = [1, 1]} : vector<4x128xf32> to vector<1x128xf32>
    %13 = vector.broadcast %12 : vector<1x128xf32> to vector<4x128xf32>
    %14 = arith.mulf %13, %4 : vector<4x128xf32>
    %15 = arith.addf %11, %14 : vector<4x128xf32>
    %16 = vector.extract_strided_slice %5 {offsets = [3, 0], sizes = [1, 128], strides = [1, 1]} : vector<4x128xf32> to vector<1x128xf32>
    %17 = arith.mulf %2, %4 : vector<4x128xf32>
    %18 = vector.broadcast %16 : vector<1x128xf32> to vector<4x128xf32>
    %19 = arith.mulf %18, %17 : vector<4x128xf32>
    %20 = arith.addf %15, %19 : vector<4x128xf32>
    %c0_8 = arith.constant 0 : index
    %c0_9 = arith.constant 0 : index
    %21 = vector.load %arg6[%c0_8, %c0_9] : memref<4x128xf32, #tpu.memory_space<vmem>>, vector<4x128xf32>
    tpu.vector_store %arg6[%c0_8, %c0_9], %20 {strides = array<i32>} : memref<4x128xf32, #tpu.memory_space<vmem>>, vector<4x128xf32>,
    return
  }
  func.func @transform_0(%arg0: i32, %arg1: i32) -> (i32, i32) {
    %c0_i32 = arith.constant 0 : i32
    %c0_i32_0 = arith.constant 0 : i32
    return %arg1, %c0_i32 : i32, i32
  }
  func.func @transform_1(%arg0: i32, %arg1: i32) -> (i32, i32) {
    %c0_i32 = arith.constant 0 : i32
    %c0_i32_0 = arith.constant 0 : i32
    return %c0_i32, %arg0 : i32, i32
  }
  func.func @transform_2(%arg0: i32, %arg1: i32) -> (i32, i32) {
    %c0_i32 = arith.constant 0 : i32
    %c0_i32_0 = arith.constant 0 : i32
    return %c0_i32, %arg0 : i32, i32
  }
  func.func @transform_3(%arg0: i32, %arg1: i32) -> (i32, i32) {
    %c0_i32 = arith.constant 0 : i32
    %c0_i32_0 = arith.constant 0 : i32
    return %c0_i32, %arg0 : i32, i32
  }
  func.func @transform_4(%arg0: i32, %arg1: i32) -> (i32, i32) {
    %c0_i32 = arith.constant 0 : i32
    return %arg1, %arg0 : i32, i32
  }
}

</mosaic_0001>

<llo_original>
// kernel: tpu_custom_call.1
$region0: #{tpu_custom_call.1}
  #allocation0 [shape = 'u32[]', space=smem, size = 0x4, offset = 0x4, fixed_abs, tag = 'smem constant byte address 0x4 - core index']
  #allocation1 [shape = 'u32[72,128]{1,0:T(1,128)}', space=vmem, size = 0x9000, scoped, tag = 'internal scratch']
  %s0 = inlined_call_operand.hbm [shape: f32[4,128], index: 0, kind: input, shape index: {}]
  %s1 = inlined_call_operand.hbm [shape: f32[128,128], index: 1, kind: input, shape index: {}]
  %s2 = inlined_call_operand.hbm [shape: f32[128,128], index: 2, kind: input, shape index: {}]
  %s3 = inlined_call_operand.hbm [shape: f32[4,128], index: 3, kind: input, shape index: {}]
  %s4 = inlined_call_operand.hbm [shape: f32[4,128], index: 4, kind: output, shape index: {}]
  %s5 = sld [smem:[#allocation0]]
  $region42: #{tpu_custom_call.1} parent=0
    _
  %s7 = ssub.s32 1, %s5
  %s8 = scalar_select 0, %s7, %s5
  $region1: #{tpu_custom_call.1} parent=0
    #allocation2 [shape = 'u8[2048]{0}', space=vmem, size = 0x800, scoped, tag = 'input window, operand 0, single buffered']
    #allocation3 [shape = 's32[1]{0}', space=sflag, size = 0x4, scoped, tag = 'scoped memory for tpu_custom_call.1']
    #allocation4 [shape = 's32[1]{0}', space=sflag, size = 0x4, scoped, tag = 'scoped memory for tpu_custom_call.1']
    #allocation5 [shape = 'u8[65536]{0}', space=vmem, size = 0x10000, scoped, tag = 'input window, operand 1, single buffered']
    #allocation6 [shape = 's32[1]{0}', space=sflag, size = 0x4, scoped, tag = 'scoped memory for tpu_custom_call.1']
    #allocation7 [shape = 'u8[65536]{0}', space=vmem, size = 0x10000, scoped, tag = 'input window, operand 2, single buffered']
    #allocation8 [shape = 'u8[2048]{0}', space=vmem, size = 0x800, scoped, tag = 'input window, operand 3, single buffered']
    #allocation9 [shape = 's32[1]{0}', space=sflag, size = 0x4, scoped, tag = 'scoped memory for tpu_custom_call.1']
    #allocation10 [shape = 'u8[2048]{0}', space=vmem, size = 0x800, scoped, tag = 'output window, operand 0, single buffered']
    %9 = vsyncpa [#allocation3], 0
    %10 = vsyncpa [#allocation6], 0
    %11 = vsyncpa [#allocation9], 0
    %12 = vsyncpa [#allocation4], 0
    // Predicated region
    $region2: #{tpu_custom_call.1} parent=1 // pred_check
      _
    $region3: #{tpu_custom_call.1} parent=1 // pred_check_branch
      %14 = sbr.rel (0) target = $region5
    $region4: #{tpu_custom_call.1} parent=1 // pred_region
      %16 = vsyncadd [#allocation3], 0
      %s18 = sshll.u32 %s0, 4
      %s19 = int_to_ptr.hbm [resolvable:$true] %s18
      %s20 = sshll.u32 [#allocation2], 4
      %s21 = int_to_ptr.vmem [resolvable:$true] %s20
      %23 = dma.hbm_to_vmem [thread:$0]  %s19, 64, %s21, [#allocation3]
    $region5: #{tpu_custom_call.1} parent=1 // pred_fallthru
      _
    // Predicated region
    $region6: #{tpu_custom_call.1} parent=1 // pred_check
      _
    $region7: #{tpu_custom_call.1} parent=1 // pred_check_branch
      %25 = sbr.rel (0) target = $region9
    $region8: #{tpu_custom_call.1} parent=1 // pred_region
      %27 = vsyncadd [#allocation6], 0
      %s28 = sshll.u32 %s1, 4
      %s29 = int_to_ptr.hbm [resolvable:$true] %s28
      %s30 = sshll.u32 [#allocation5], 4
      %s31 = int_to_ptr.vmem [resolvable:$true] %s30
      %36 = dma.hbm_to_vmem [thread:$0]  %s29, 2048, %s31, [#allocation6], 128, 128, 8
    $region9: #{tpu_custom_call.1} parent=1 // pred_fallthru
      _
    // Predicated region
    $region10: #{tpu_custom_call.1} parent=1 // pred_check
      _
    $region11: #{tpu_custom_call.1} parent=1 // pred_check_branch
      %38 = sbr.rel (0) target = $region13
    $region12: #{tpu_custom_call.1} parent=1 // pred_region
      %40 = vsyncadd [#allocation6], 0
      %s41 = sshll.u32 %s2, 4
      %s42 = int_to_ptr.hbm [resolvable:$true] %s41
      %s43 = sshll.u32 [#allocation7], 4
      %s44 = int_to_ptr.vmem [resolvable:$true] %s43
      %49 = dma.hbm_to_vmem [thread:$0]  %s42, 2048, %s44, [#allocation6], 128, 128, 8
    $region13: #{tpu_custom_call.1} parent=1 // pred_fallthru
      _
    // Predicated region
    $region14: #{tpu_custom_call.1} parent=1 // pred_check
      _
    $region15: #{tpu_custom_call.1} parent=1 // pred_check_branch
      %51 = sbr.rel (0) target = $region17
    $region16: #{tpu_custom_call.1} parent=1 // pred_region
      %53 = vsyncadd [#allocation9], 0
      %s55 = sshll.u32 %s3, 4
      %s56 = int_to_ptr.hbm [resolvable:$true] %s55
      %s57 = sshll.u32 [#allocation8], 4
      %s58 = int_to_ptr.vmem [resolvable:$true] %s57
      %60 = dma.hbm_to_vmem [thread:$0]  %s56, 64, %s58, [#allocation9]
    $region17: #{tpu_custom_call.1} parent=1 // pred_fallthru
      _
    // Predicated region
    $region18: #{tpu_custom_call.1} parent=1 // pred_check
      _
    $region19: #{tpu_custom_call.1} parent=1 // pred_check_branch
      %62 = sbr.rel (0) target = $region21
    $region20: #{tpu_custom_call.1} parent=1 // pred_region
      %64 = dma.done [#allocation3], 64
    $region21: #{tpu_custom_call.1} parent=1 // pred_fallthru
      _
    // Predicated region
    $region22: #{tpu_custom_call.1} parent=1 // pred_check
      _
    $region23: #{tpu_custom_call.1} parent=1 // pred_check_branch
      %66 = sbr.rel (0) target = $region25
    $region24: #{tpu_custom_call.1} parent=1 // pred_region
      %68 = dma.done [#allocation6], 2048
    $region25: #{tpu_custom_call.1} parent=1 // pred_fallthru
      _
    // Predicated region
    $region26: #{tpu_custom_call.1} parent=1 // pred_check
      _
    $region27: #{tpu_custom_call.1} parent=1 // pred_check_branch
      %70 = sbr.rel (0) target = $region29
    $region28: #{tpu_custom_call.1} parent=1 // pred_region
      %72 = dma.done [#allocation6], 2048
    $region29: #{tpu_custom_call.1} parent=1 // pred_fallthru
      _
    // Predicated region
    $region30: #{tpu_custom_call.1} parent=1 // pred_check
      _
    $region31: #{tpu_custom_call.1} parent=1 // pred_check_branch
      %74 = sbr.rel (0) target = $region33
    $region32: #{tpu_custom_call.1} parent=1 // pred_region
      %76 = dma.done [#allocation9], 64
    $region33: #{tpu_custom_call.1} parent=1 // pred_fallthru
      _
    %v77 = vld [vmem:[#allocation2] sm:$0xf]
    %v78 = vld [vmem:[#allocation5] sm:$0xff]
    %v79 = vld [vmem:[#allocation5 + $0x8] sm:$0xff]
    %v80 = vld [vmem:[#allocation5 + $0x10] sm:$0xff]
    %v81 = vld [vmem:[#allocation5 + $0x18] sm:$0xff]
    %v82 = vld [vmem:[#allocation5 + $0x20] sm:$0xff]
    %v83 = vld [vmem:[#allocation5 + $0x28] sm:$0xff]
    %v84 = vld [vmem:[#allocation5 + $0x30] sm:$0xff]
    %v85 = vld [vmem:[#allocation5 + $0x38] sm:$0xff]
    %v86 = vld [vmem:[#allocation5 + $0x40] sm:$0xff]
    %v87 = vld [vmem:[#allocation5 + $0x48] sm:$0xff]
    %v88 = vld [vmem:[#allocation5 + $0x50] sm:$0xff]
    %v89 = vld [vmem:[#allocation5 + $0x58] sm:$0xff]
    %v90 = vld [vmem:[#allocation5 + $0x60] sm:$0xff]
    %v91 = vld [vmem:[#allocation5 + $0x68] sm:$0xff]
    %v92 = vld [vmem:[#allocation5 + $0x70] sm:$0xff]
    %v93 = vld [vmem:[#allocation5 + $0x78] sm:$0xff]
    %94 = vmatpush.msra.mxu0 %v93
    %95 = vmatpush.msra.mxu0 %v92
    %96 = vmatpush.msra.mxu0 %v91
    %97 = vmatpush.msra.mxu0 %v90
    %98 = vmatpush.msra.mxu0 %v89
    %99 = vmatpush.msra.mxu0 %v88
    %100 = vmatpush.msra.mxu0 %v87
    %101 = vmatpush.msra.mxu0 %v86
    %102 = vmatpush.msra.mxu0 %v85
    %103 = vmatpush.msra.mxu0 %v84
    %104 = vmatpush.msra.mxu0 %v83
    %105 = vmatpush.msra.mxu0 %v82
    %106 = vmatpush.msra.mxu0 %v81
    %107 = vmatpush.msra.mxu0 %v80
    %108 = vmatpush.msra.mxu0 %v79
    %109 = vmatpush.msra.mxu0 %v78
    %110 = vmatmul.f32.gmra.mxu0 %v77
    %v111 = vpop.f32.mrf.mxu0
    %v112 = vadd.f32 0.0, %v111
    %113 = vdwg.mxu0
    %v114 = vld [vmem:[#allocation7] sm:$0xff]
    %v115 = vld [vmem:[#allocation7 + $0x8] sm:$0xff]
    %v116 = vld [vmem:[#allocation7 + $0x10] sm:$0xff]
    %v117 = vld [vmem:[#allocation7 + $0x18] sm:$0xff]
    %v118 = vld [vmem:[#allocation7 + $0x20] sm:$0xff]
    %v119 = vld [vmem:[#allocation7 + $0x28] sm:$0xff]
    %v120 = vld [vmem:[#allocation7 + $0x30] sm:$0xff]
    %v121 = vld [vmem:[#allocation7 + $0x38] sm:$0xff]
    %v122 = vld [vmem:[#allocation7 + $0x40] sm:$0xff]
    %v123 = vld [vmem:[#allocation7 + $0x48] sm:$0xff]
    %v124 = vld [vmem:[#allocation7 + $0x50] sm:$0xff]
    %v125 = vld [vmem:[#allocation7 + $0x58] sm:$0xff]
    %v126 = vld [vmem:[#allocation7 + $0x60] sm:$0xff]
    %v127 = vld [vmem:[#allocation7 + $0x68] sm:$0xff]
    %v128 = vld [vmem:[#allocation7 + $0x70] sm:$0xff]
    %v129 = vld [vmem:[#allocation7 + $0x78] sm:$0xff]
    %130 = vmatpush.msra.mxu0 %v129
    %131 = vmatpush.msra.mxu0 %v128
    %132 = vmatpush.msra.mxu0 %v127
    %133 = vmatpush.msra.mxu0 %v126
    %134 = vmatpush.msra.mxu0 %v125
    %135 = vmatpush.msra.mxu0 %v124
    %136 = vmatpush.msra.mxu0 %v123
    %137 = vmatpush.msra.mxu0 %v122
    %138 = vmatpush.msra.mxu0 %v121
    %139 = vmatpush.msra.mxu0 %v120
    %140 = vmatpush.msra.mxu0 %v119
    %141 = vmatpush.msra.mxu0 %v118
    %142 = vmatpush.msra.mxu0 %v117
    %143 = vmatpush.msra.mxu0 %v116
    %144 = vmatpush.msra.mxu0 %v115
    %145 = vmatpush.msra.mxu0 %v114
    %146 = vmatmul.f32.gmra.mxu0 %v77
    %v147 = vpop.f32.mrf.mxu0
    %v148 = vadd.f32 0.0, %v147
    %149 = vdwg.mxu0
    %v150 = vld [vmem:[#allocation8] sm:$0xf]
    %v151 = vperm.slane %v150, 1
    %v152 = vmul.f32 %v151, %v112
    %v153 = vperm.slane %v150, 0
    %v154 = vadd.f32 %v153, %v152
    %v155 = vperm.slane %v150, 2
    %v156 = vmul.f32 %v155, %v148
    %v157 = vadd.f32 %v154, %v156
    %v158 = vmul.f32 %v112, %v148
    %v159 = vperm.slane %v150, 3
    %v160 = vmul.f32 %v159, %v158
    %v161 = vadd.f32 %v157, %v160
    %162 = vst [vmem:[#allocation10] sm:$0xf] %v161
    // Predicated region
    $region34: #{tpu_custom_call.1} parent=1 // pred_check
      _
    $region35: #{tpu_custom_call.1} parent=1 // pred_check_branch
      %164 = sbr.rel (0) target = $region37
    $region36: #{tpu_custom_call.1} parent=1 // pred_region
      %166 = vsyncadd [#allocation4], 0
      %s168 = sshll.u32 [#allocation10], 4
      %s169 = int_to_ptr.vmem [resolvable:$true] %s168
      %s170 = sshll.u32 %s4, 4
      %s171 = int_to_ptr.hbm [resolvable:$true] %s170
      %173 = dma.vmem_to_hbm [thread:$0]  %s169, 64, %s171, [#allocation4]
    $region37: #{tpu_custom_call.1} parent=1 // pred_fallthru
      _
    // Predicated region
    $region38: #{tpu_custom_call.1} parent=1 // pred_check
      _
    $region39: #{tpu_custom_call.1} parent=1 // pred_check_branch
      %175 = sbr.rel (0) target = $region41
    $region40: #{tpu_custom_call.1} parent=1 // pred_region
      %177 = dma.done [#allocation4], 64
    $region41: #{tpu_custom_call.1} parent=1 // pred_fallthru
      _
    %178 = vsyncpa [#allocation3], 1
    %179 = vsyncpa [#allocation6], 1
    %180 = vsyncpa [#allocation9], 1
    %181 = vsyncpa [#allocation4], 1

</llo_original>
